<compile_context>
chip_gen: v6e
topology: v6e:2x2x1
jax: 0.10.0
libtpu: 0.0.40
codegen_flags: <defaults>
</compile_context>

<pallas_src>
import functools

import jax
import jax.numpy as jnp
from jax.experimental import pallas as pl
from jax.experimental.pallas import tpu as pltpu

_NEG_BIG = -1e30  # Python literal: inlined into the kernel jaxpr, never a captured const.


def _round_up(x, m):
    return pl.cdiv(x, m) * m


# --------------------------------------------------------------------------- #
# Kernel: one (tb, tv) output tile = seq-max of the masked hidden->vocab
# projection, then bias + relu + log1p applied once to the pooled tile.
# --------------------------------------------------------------------------- #
def _splade_pool_kernel(h_ref, maskb_ref, w_ref, b_ref, out_ref,
                        *, seq_chunk, n_chunks):
    # h_ref:     (tb, S_pad, H)  bf16  hidden states for tb batch rows
    # maskb_ref: (tb, S_pad)     f32   additive mask bias: 0 valid / -1e30 pad
    # w_ref:     (H, tv)         bf16  vocab-projection tile
    # b_ref:     (1, tv)         f32   bias tile
    # out_ref:   (tb, tv)        f32   pooled sparse reps tile
    tb, _, hdim = h_ref.shape
    tv = w_ref.shape[1]

    def chunk_pool(c):
        start = c * seq_chunk                       # Python int -> static slices
        # (tb, chunk, H) -> (tb*chunk, H): free relayout because chunk % 8 == 0.
        h2 = h_ref[:, pl.ds(start, seq_chunk), :].reshape(tb * seq_chunk, hdim)
        # One MXU matmul per chunk, f32 accumulation.
        logits = jnp.dot(h2, w_ref[...], preferred_element_type=jnp.float32)
        # Additive binary mask broadcast over the vocab tile; only a
        # (tb, chunk, tv) f32 intermediate lives at any time.
        biased = (logits.reshape(tb, seq_chunk, tv)
                  + maskb_ref[:, pl.ds(start, seq_chunk)][:, :, None])
        return jnp.max(biased, axis=1)              # (tb, tv)

    pooled = chunk_pool(0)
    for c in range(1, n_chunks):                    # small static loop (unrolled)
        pooled = jnp.maximum(pooled, chunk_pool(c))

    # bias + relu + log1p hoisted past the pool: valid because the attention
    # mask is binary and log1p(relu(.)) is monotone with log1p(relu(x<=0)) = 0.
    out_ref[...] = jnp.log1p(jnp.maximum(pooled + b_ref[...], 0.0))


# --------------------------------------------------------------------------- #
# One-time weight prep (do at model-load time, NOT per forward).
# --------------------------------------------------------------------------- #
def prepare_vocab_projection(w_vocab, b_vocab, *, tv=512):
    """Cast the vocab projection to bf16 and zero-pad the vocab axis to a tile
    multiple.  Returns (w_bf16, b_f32, tv, vocab_size)."""
    H, V = w_vocab.shape
    tv = max(128, (tv // 128) * 128)               # lanes (multiple of 256 preferred on v6e/v7x)
    tv = min(tv, _round_up(V, 128))
    V_pad = _round_up(V, tv)
    w = w_vocab.astype(jnp.bfloat16)
    b = jnp.asarray(b_vocab, jnp.float32).reshape(1, V)
    if V_pad != V:
        w = jnp.pad(w, ((0, 0), (0, V_pad - V)))
        b = jnp.pad(b, ((0, 0), (0, V_pad - V)))
    return w, b, tv, V


def splade_sentence_embedding(input_ids, attention_mask, emb_table,
                              w_bf16, b_f32, vocab_size, *,
                              tv, tb=8, seq_chunk=128):
    """Returns doc_reps of shape (B, vocab_size), f32 — the 'sentence_embedding'."""
    B, S = input_ids.shape
    H, V_pad = w_bf16.shape
    assert V_pad % tv == 0

    # ---- tile sizes & padding -------------------------------------------- #
    tb = max(8, (tb // 8) * 8)                     # output sublanes
    B_pad = _round_up(B, tb)
    seq_chunk = max(8, (seq_chunk // 8) * 8)       # sublane-aligned chunks
    seq_chunk = min(seq_chunk, _round_up(S, 8))
    while _round_up(S, seq_chunk) // seq_chunk > 16:   # bound the unrolled loop
        seq_chunk *= 2
    S_pad = _round_up(S, seq_chunk)
    n_chunks = S_pad // seq_chunk

    # ---- glue: embedding gather (the synthetic "encoder") ----------------- #
    # TODO(synk): real SPLADE-v3 runs a full BERT encoder here; only the MLM
    # head + SPLADE activation/pooling is expressed in the Pallas kernel.
    h = emb_table[input_ids].astype(jnp.bfloat16)                   # (B, S, H)
    # Lane-dense additive mask: 0 where attended, -1e30 where padded (binary mask).
    mask_bias = (attention_mask.astype(jnp.float32) - 1.0) * 1e30   # (B, S)
    if B_pad != B or S_pad != S:
        h = jnp.pad(h, ((0, B_pad - B), (0, S_pad - S), (0, 0)))
        mask_bias = jnp.pad(mask_bias, ((0, B_pad - B), (0, S_pad - S)),
                            constant_values=_NEG_BIG)

    # ---- VMEM budget: double-buffered blocks + per-chunk f32 intermediate -- #
    block_bytes = (tb * S_pad * H * 2      # h (bf16)
                   + tb * S_pad * 4        # mask bias (f32)
                   + H * tv * 2            # W tile (bf16)
                   + tv * 4                # bias tile (f32)
                   + tb * tv * 4)          # out tile (f32)
    interm_bytes = 2 * tb * seq_chunk * tv * 4   # chunk logits (+ biased copy)
    vmem_needed = 2 * block_bytes + interm_bytes + (1 << 20)
    cp_kwargs = dict(dimension_semantics=("parallel", "parallel"))
    if vmem_needed > (16 << 20):
        # Never set the limit below the v6e/v7x scoped default (32 MiB).
        cp_kwargs["vmem_limit_bytes"] = int(max(vmem_needed, 32 << 20))

    grid = (B_pad // tb, V_pad // tv)      # vocab innermost: h/mask stay VMEM-resident

    kernel = functools.partial(_splade_pool_kernel,
                               seq_chunk=seq_chunk, n_chunks=n_chunks)
    out = pl.pallas_call(
        kernel,
        out_shape=jax.ShapeDtypeStruct((B_pad, V_pad), jnp.float32),
        grid_spec=pltpu.PrefetchScalarGridSpec(
            num_scalar_prefetch=0,
            grid=grid,
            in_specs=[
                pl.BlockSpec((tb, S_pad, H), lambda i, j: (i, 0, 0)),
                pl.BlockSpec((tb, S_pad), lambda i, j: (i, 0)),
                pl.BlockSpec((H, tv), lambda i, j: (0, j)),
                pl.BlockSpec((1, tv), lambda i, j: (0, j)),
            ],
            out_specs=pl.BlockSpec((tb, tv), lambda i, j: (i, j)),
        ),
        compiler_params=pltpu.CompilerParams(**cp_kwargs),
    )(h, mask_bias, w_bf16, b_f32)

    return out[:B, :vocab_size]


def _reference(input_ids, attention_mask, emb_table, w_vocab, b_vocab):
    h = emb_table[input_ids].astype(jnp.float32)
    logits = jnp.einsum("bsh,hv->bsv", h, w_vocab.astype(jnp.float32)) + b_vocab
    act = jnp.log1p(jax.nn.relu(logits))
    masked = act * attention_mask.astype(jnp.float32)[:, :, None]
    return jnp.max(masked, axis=1)


if __name__ == "__main__":
    # Small, deterministic shapes: batch=2, seq=8, hidden=32, vocab=256.
    B, S, H, V = 2, 8, 32, 256
    key = jax.random.PRNGKey(0)
    k_emb, k_w, k_b, k_ids = jax.random.split(key, 4)

    emb_table = jax.random.normal(k_emb, (V, H), dtype=jnp.float32) * 0.5
    w_vocab = jax.random.normal(k_w, (H, V), dtype=jnp.float32) * 0.1
    b_vocab = jax.random.normal(k_b, (V,), dtype=jnp.float32) * 0.05

    input_ids = jax.random.randint(k_ids, (B, S), 0, V, dtype=jnp.int32)
    # Mask out the tail of the second sequence (padding), like real tokenization.
    attention_mask = jnp.array(
        [[1] * S, [1] * (S - 3) + [0] * 3], dtype=jnp.int32)

    # One-time weight prep (bf16 cast + vocab padding), then the fused forward.
    w_bf16, b_f32, tv, vocab_size = prepare_vocab_projection(
        w_vocab, b_vocab, tv=512)
    doc_reps = splade_sentence_embedding(
        input_ids, attention_mask, emb_table, w_bf16, b_f32, vocab_size,
        tv=tv, tb=8, seq_chunk=128)
    doc_reps = jax.block_until_ready(doc_reps)

    ref = _reference(input_ids, attention_mask, emb_table, w_vocab, b_vocab)
    assert doc_reps.shape == (B, V)
    # bf16 MXU inputs (f32 accumulation) -> ~1e-2 tolerance.
    assert jnp.allclose(doc_reps, ref, atol=2e-2, rtol=2e-2)

    print("KERNEL_OK")
</pallas_src>

<mosaic_0001>
module attributes {stable_mosaic.version = 11 : i64} {
  func.func @_splade_pool_kernel(%arg0: i32, %arg1: i32, %arg2: memref<8x8x32xbf16, #tpu.memory_space<vmem>>, %arg3: memref<8x8xf32, #tpu.memory_space<vmem>>, %arg4: memref<32x256xbf16, #tpu.memory_space<vmem>>, %arg5: memref<1x256xf32, #tpu.memory_space<vmem>>, %arg6: memref<8x256xf32, #tpu.memory_space<vmem>>) attributes {dimension_semantics = [#tpu.dimension_semantics<parallel>, #tpu.dimension_semantics<parallel>], iteration_bounds = array<i64: 1, 1>, scalar_prefetch = 0 : i64, scratch_operands = 0 : i64, tpu.core_type = #tpu.core_type<tc>, window_params = [{transform_indices = @transform_0, window_bounds = array<i64: 8, 8, 32>}, {transform_indices = @transform_1, window_bounds = array<i64: 8, 8>}, {transform_indices = @transform_2, window_bounds = array<i64: 32, 256>}, {transform_indices = @transform_3, window_bounds = array<i64: 1, 256>}, {transform_indices = @transform_4, window_bounds = array<i64: 8, 256>}]} {
    %c0 = arith.constant 0 : index
    %c0_0 = arith.constant 0 : index
    %c0_1 = arith.constant 0 : index
    %0 = vector.load %arg2[%c0, %c0_0, %c0_1] : memref<8x8x32xbf16, #tpu.memory_space<vmem>>, vector<8x8x32xbf16>
    %1 = vector.shape_cast %0 : vector<8x8x32xbf16> to vector<64x32xbf16>
    %c0_2 = arith.constant 0 : index
    %c0_3 = arith.constant 0 : index
    %2 = vector.load %arg4[%c0_2, %c0_3] : memref<32x256xbf16, #tpu.memory_space<vmem>>, vector<32x256xbf16>
    %cst = arith.constant dense<0.000000e+00> : vector<64x256xf32>
    %3 = tpu.matmul %1, %2, %cst {dimension_numbers = #tpu.dot_dimension_numbers<[1], [0], [0], [1], [0, 0, 1, 1], [], []>} : vector<64x32xbf16>, vector<32x256xbf16>, vector<64x256xf32> -> vector<64x256xf32>
    %4 = vector.shape_cast %3 : vector<64x256xf32> to vector<8x8x256xf32>
    %c0_4 = arith.constant 0 : index
    %c0_5 = arith.constant 0 : index
    %5 = vector.load %arg3[%c0_4, %c0_5] : memref<8x8xf32, #tpu.memory_space<vmem>>, vector<8x8xf32>
    %6 = vector.shape_cast %5 : vector<8x8xf32> to vector<8x8x1xf32>
    %7 = vector.broadcast %6 : vector<8x8x1xf32> to vector<8x8x256xf32>
    %8 = arith.addf %4, %7 : vector<8x8x256xf32>
    %cst_6 = arith.constant dense<0xFF800000> : vector<8x256xf32>
    %9 = vector.multi_reduction <maximumf>, %8, %cst_6 [1] : vector<8x8x256xf32> to vector<8x256xf32>
    %c0_7 = arith.constant 0 : index
    %c0_8 = arith.constant 0 : index
    %10 = vector.load %arg5[%c0_7, %c0_8] : memref<1x256xf32, #tpu.memory_space<vmem>>, vector<1x256xf32>
    %11 = vector.broadcast %10 : vector<1x256xf32> to vector<8x256xf32>
    %12 = arith.addf %9, %11 : vector<8x256xf32>
    %cst_9 = arith.constant 0.000000e+00 : f32
    %13 = vector.broadcast %cst_9 : f32 to vector<8x256xf32>
    %14 = arith.maximumf %12, %13 : vector<8x256xf32>
    %15 = math.log1p %14 : vector<8x256xf32>
    %c0_10 = arith.constant 0 : index
    %c0_11 = arith.constant 0 : index
    %16 = vector.load %arg6[%c0_10, %c0_11] : memref<8x256xf32, #tpu.memory_space<vmem>>, vector<8x256xf32>
    tpu.vector_store %arg6[%c0_10, %c0_11], %15 {strides = array<i32>} : memref<8x256xf32, #tpu.memory_space<vmem>>, vector<8x256xf32>,
    return
  }
  func.func @transform_0(%arg0: i32, %arg1: i32) -> (i32, i32, i32) {
    %c0_i32 = arith.constant 0 : i32
    %c0_i32_0 = arith.constant 0 : i32
    %c0_i32_1 = arith.constant 0 : i32
    return %arg0, %c0_i32, %c0_i32_0 : i32, i32, i32
  }
  func.func @transform_1(%arg0: i32, %arg1: i32) -> (i32, i32) {
    %c0_i32 = arith.constant 0 : i32
    %c0_i32_0 = arith.constant 0 : i32
    return %arg0, %c0_i32 : i32, i32
  }
  func.func @transform_2(%arg0: i32, %arg1: i32) -> (i32, i32) {
    %c0_i32 = arith.constant 0 : i32
    %c0_i32_0 = arith.constant 0 : i32
    return %c0_i32, %arg1 : i32, i32
  }
  func.func @transform_3(%arg0: i32, %arg1: i32) -> (i32, i32) {
    %c0_i32 = arith.constant 0 : i32
    %c0_i32_0 = arith.constant 0 : i32
    return %c0_i32, %arg1 : i32, i32
  }
  func.func @transform_4(%arg0: i32, %arg1: i32) -> (i32, i32) {
    %c0_i32 = arith.constant 0 : i32
    return %arg0, %arg1 : i32, i32
  }
}

</mosaic_0001>

<llo_original>
// kernel: tpu_custom_call.1
$region0: #{tpu_custom_call.1}
  #allocation0 [shape = 'u32[]', space=smem, size = 0x4, offset = 0x4, fixed_abs, tag = 'smem constant byte address 0x4 - core index']
  #allocation1 [shape = 'u32[144,128]{1,0:T(1,128)}', space=vmem, size = 0x12000, scoped, tag = 'internal scratch']
  %s0 = inlined_call_operand.hbm [shape: bf16[8,8,32], index: 0, kind: input, shape index: {}]
  %s1 = inlined_call_operand.hbm [shape: f32[8,8], index: 1, kind: input, shape index: {}]
  %s2 = inlined_call_operand.hbm [shape: bf16[32,256], index: 2, kind: input, shape index: {}]
  %s3 = inlined_call_operand.vmem [shape: f32[1,256], index: 3, kind: input, shape index: {}]
  %s4 = inlined_call_operand.hbm [shape: f32[8,256], index: 4, kind: output, shape index: {}]
  %s5 = sld [smem:[#allocation0]]
  $region38: #{tpu_custom_call.1} parent=0
    _
  %s7 = ssub.s32 1, %s5
  %s8 = scalar_select 0, %s7, %s5
  $region1: #{tpu_custom_call.1} parent=0
    #allocation2 [shape = 'u8[16384]{0}', space=vmem, size = 0x4000, scoped, tag = 'input window, operand 0, single buffered']
    #allocation3 [shape = 's32[1]{0}', space=sflag, size = 0x4, scoped, tag = 'scoped memory for tpu_custom_call.1']
    #allocation4 [shape = 's32[1]{0}', space=sflag, size = 0x4, scoped, tag = 'scoped memory for tpu_custom_call.1']
    #allocation5 [shape = 'u8[4096]{0}', space=vmem, size = 0x1000, scoped, tag = 'input window, operand 1, single buffered']
    #allocation6 [shape = 's32[1]{0}', space=sflag, size = 0x4, scoped, tag = 'scoped memory for tpu_custom_call.1']
    #allocation7 [shape = 'u8[16384]{0}', space=vmem, size = 0x4000, scoped, tag = 'input window, operand 2, single buffered']
    #allocation8 [shape = 'u8[8192]{0}', space=vmem, size = 0x2000, scoped, tag = 'output window, operand 0, single buffered']
    %9 = vsyncpa [#allocation3], 0
    %10 = vsyncpa [#allocation6], 0
    %11 = vsyncpa [#allocation4], 0
    // Predicated region
    $region2: #{tpu_custom_call.1} parent=1 // pred_check
      _
    $region3: #{tpu_custom_call.1} parent=1 // pred_check_branch
      %13 = sbr.rel (0) target = $region5
    $region4: #{tpu_custom_call.1} parent=1 // pred_region
      %s15 = ssub.s32 512, 512
      %16 = vsyncadd [#allocation3], %s15
      %s17 = sshll.u32 [#allocation2], 4
      %s18 = int_to_ptr.vmem [resolvable:$true] %s17
      %23 = dma.hbm_to_vmem [thread:$0]  %s0, 512, %s18, [#allocation3], 64, 64, 4
    $region5: #{tpu_custom_call.1} parent=1 // pred_fallthru
      _
    // Predicated region
    $region6: #{tpu_custom_call.1} parent=1 // pred_check
      _
    $region7: #{tpu_custom_call.1} parent=1 // pred_check_branch
      %25 = sbr.rel (0) target = $region9
    $region8: #{tpu_custom_call.1} parent=1 // pred_region
      %s27 = ssub.s32 128, 128
      %28 = vsyncadd [#allocation6], %s27
      %s30 = sshll.u32 [#allocation5], 4
      %s31 = int_to_ptr.vmem [resolvable:$true] %s30
      %33 = dma.hbm_to_vmem [thread:$0]  %s1, 128, %s31, [#allocation6]
    $region9: #{tpu_custom_call.1} parent=1 // pred_fallthru
      _
    // Predicated region
    $region10: #{tpu_custom_call.1} parent=1 // pred_check
      _
    $region11: #{tpu_custom_call.1} parent=1 // pred_check_branch
      %35 = sbr.rel (0) target = $region13
    $region12: #{tpu_custom_call.1} parent=1 // pred_region
      %s37 = ssub.s32 512, 512
      %38 = vsyncadd [#allocation6], %s37
      %s39 = sshll.u32 [#allocation7], 4
      %s40 = int_to_ptr.vmem [resolvable:$true] %s39
      %45 = dma.hbm_to_vmem [thread:$0]  %s2, 512, %s40, [#allocation6], 128, 128, 8
    $region13: #{tpu_custom_call.1} parent=1 // pred_fallthru
      _
    // Predicated region
    $region14: #{tpu_custom_call.1} parent=1 // pred_check
      _
    $region15: #{tpu_custom_call.1} parent=1 // pred_check_branch
      %47 = sbr.rel (0) target = $region17
    $region16: #{tpu_custom_call.1} parent=1 // pred_region
      _
    $region17: #{tpu_custom_call.1} parent=1 // pred_fallthru
      _
    // Predicated region
    $region18: #{tpu_custom_call.1} parent=1 // pred_check
      _
    $region19: #{tpu_custom_call.1} parent=1 // pred_check_branch
      %49 = sbr.rel (0) target = $region21
    $region20: #{tpu_custom_call.1} parent=1 // pred_region
      %50 = dma.done [#allocation3], 512
    $region21: #{tpu_custom_call.1} parent=1 // pred_fallthru
      _
    // Predicated region
    $region22: #{tpu_custom_call.1} parent=1 // pred_check
      _
    $region23: #{tpu_custom_call.1} parent=1 // pred_check_branch
      %52 = sbr.rel (0) target = $region25
    $region24: #{tpu_custom_call.1} parent=1 // pred_region
      %53 = dma.done [#allocation6], 128
    $region25: #{tpu_custom_call.1} parent=1 // pred_fallthru
      _
    // Predicated region
    $region26: #{tpu_custom_call.1} parent=1 // pred_check
      _
    $region27: #{tpu_custom_call.1} parent=1 // pred_check_branch
      %55 = sbr.rel (0) target = $region29
    $region28: #{tpu_custom_call.1} parent=1 // pred_region
      %56 = dma.done [#allocation6], 512
    $region29: #{tpu_custom_call.1} parent=1 // pred_fallthru
      _
    %v58 = vld [vmem:[#allocation2] sm:$0xf]
    %v59 = vld [vmem:[#allocation2 + $0x4] sm:$0xf]
    %v60 = vld [vmem:[#allocation2 + $0x8] sm:$0xf]
    %v61 = vld [vmem:[#allocation2 + $0xc] sm:$0xf]
    %v62 = vld [vmem:[#allocation2 + $0x10] sm:$0xf]
    %v63 = vld [vmem:[#allocation2 + $0x14] sm:$0xf]
    %v64 = vld [vmem:[#allocation2 + $0x18] sm:$0xf]
    %v65 = vld [vmem:[#allocation2 + $0x1c] sm:$0xf]
    %v66 = vld [vmem:[#allocation7] sm:$0xff]
    %v67 = vld [vmem:[#allocation7 + $0x8] sm:$0xff]
    %v68 = vld [vmem:[#allocation7 + $0x10] sm:$0xff]
    %v69 = vld [vmem:[#allocation7 + $0x18] sm:$0xff]
    %v78 = vunpack.c.l.b16 %v58
    %v79 = vunpack.c.l.b16 %v59
    %v80 = vunpack.c.l.b16 %v60
    %v81 = vunpack.c.l.b16 %v61
    %v82 = vunpack.c.l.b16 %v62
    %v83 = vunpack.c.l.b16 %v63
    %v84 = vunpack.c.l.b16 %v64
    %v85 = vunpack.c.l.b16 %v65
    %v86 = vpack.c.b16 %v79, %v78
    %v87 = vpack.c.b16 %v81, %v80
    %v88 = vpack.c.b16 %v83, %v82
    %v89 = vpack.c.b16 %v85, %v84
    %v94 = vunpack.c.l.b16 %v66
    %v95 = vunpack.c.h.b16 %v66
    %v96 = vunpack.c.l.b16 %v67
    %v97 = vunpack.c.h.b16 %v67
    %v98 = vunpack.c.l.b16 %v68
    %v99 = vunpack.c.h.b16 %v68
    %v100 = vunpack.c.l.b16 %v69
    %v101 = vunpack.c.h.b16 %v69
    %v102 = vpack.c.b16 %v96, %v94
    %v103 = vpack.c.b16 %v97, %v95
    %v104 = vpack.c.b16 %v100, %v98
    %v105 = vpack.c.b16 %v101, %v99
    %vm110 = vcmask 261120
    %v112 = vsel %vm110, %v86, 0
    %v115 = vsel %vm110, %v87, 0
    %v118 = vsel %vm110, %v88, 0
    %v121 = vsel %vm110, %v89, 0
    %123 = vmatprep.subr.bf16.mxu0 0
    %124 = vmatpush1.bf16.msra.mxu0 0
    %125 = vmatprep.subr.bf16.mxu0 0
    %126 = vmatpush1.bf16.msra.mxu0 0
    %127 = vmatprep.subr.bf16.mxu0 0
    %128 = vmatpush1.bf16.msra.mxu0 0
    %129 = vmatprep.subr.bf16.mxu0 0
    %130 = vmatpush1.bf16.msra.mxu0 0
    %131 = vmatprep.subr.bf16.mxu0 0
    %132 = vmatpush1.bf16.msra.mxu0 0
    %133 = vmatprep.subr.bf16.mxu0 0
    %134 = vmatpush1.bf16.msra.mxu0 0
    %135 = vmatprep.subr.bf16.mxu0 %v105
    %136 = vmatpush1.bf16.msra.mxu0 %v104
    %137 = vmatprep.subr.bf16.mxu0 %v103
    %138 = vmatpush1.bf16.msra.mxu0 %v102
    %139 = vmatprep.subr.bf16.mxu0 0
    %140 = vmatpush2.bf16.msra.mxu0 0
    %141 = vmatprep.subr.bf16.mxu0 0
    %142 = vmatpush2.bf16.msra.mxu0 0
    %143 = vmatprep.subr.bf16.mxu0 0
    %144 = vmatpush2.bf16.msra.mxu0 0
    %145 = vmatprep.subr.bf16.mxu0 0
    %146 = vmatpush2.bf16.msra.mxu0 0
    %147 = vmatprep.subr.bf16.mxu0 0
    %148 = vmatpush2.bf16.msra.mxu0 0
    %149 = vmatprep.subr.bf16.mxu0 0
    %150 = vmatpush2.bf16.msra.mxu0 0
    %151 = vmatprep.subr.bf16.mxu0 0
    %152 = vmatpush2.bf16.msra.mxu0 0
    %153 = vmatprep.subr.bf16.mxu0 0
    %154 = vmatpush2.bf16.msra.mxu0 0
    %155 = vmatprep.mubr.bf16.mxu0 0
    %156 = vmatmul.mubr.bf16.gmra.mxu0 %v112
    %v157 = vpop.f32.mrf.mxu0
    %v158 = vadd.f32 0.0, %v157
    %v159 = vpop.f32.mrf.mxu0
    %v160 = vadd.f32 0.0, %v159
    %v161 = vpop.f32.mrf.mxu0
    %v162 = vadd.f32 0.0, %v161
    %v163 = vpop.f32.mrf.mxu0
    %v164 = vadd.f32 0.0, %v163
    %165 = vmatprep.mubr.bf16.mxu0 0
    %166 = vmatmul.mubr.bf16.gmra.mxu0 %v115
    %v167 = vpop.f32.mrf.mxu0
    %v168 = vadd.f32 0.0, %v167
    %v169 = vpop.f32.mrf.mxu0
    %v170 = vadd.f32 0.0, %v169
    %v171 = vpop.f32.mrf.mxu0
    %v172 = vadd.f32 0.0, %v171
    %v173 = vpop.f32.mrf.mxu0
    %v174 = vadd.f32 0.0, %v173
    %175 = vmatprep.mubr.bf16.mxu0 0
    %176 = vmatmul.mubr.bf16.gmra.mxu0 %v118
    %v177 = vpop.f32.mrf.mxu0
    %v178 = vadd.f32 0.0, %v177
    %v179 = vpop.f32.mrf.mxu0
    %v180 = vadd.f32 0.0, %v179
    %v181 = vpop.f32.mrf.mxu0
    %v182 = vadd.f32 0.0, %v181
    %v183 = vpop.f32.mrf.mxu0
    %v184 = vadd.f32 0.0, %v183
    %185 = vmatprep.mubr.bf16.mxu0 0
    %186 = vmatmul.mubr.bf16.gmra.mxu0 %v121
    %v187 = vpop.f32.mrf.mxu0
    %v188 = vadd.f32 0.0, %v187
    %v189 = vpop.f32.mrf.mxu0
    %v190 = vadd.f32 0.0, %v189
    %v191 = vpop.f32.mrf.mxu0
    %v192 = vadd.f32 0.0, %v191
    %v193 = vpop.f32.mrf.mxu0
    %v194 = vadd.f32 0.0, %v193
    %195 = vdwg.mxu0
    %v196 = vld [vmem:[#allocation5] sm:$0xff]
    %v197 = vlaneseq
    %v198 = vshrl.u32 %v197, 7
    %v199 = vsub.s32 0, %v198
    %v200 = vrot.slane %v196, %v199
    %202 = vbcast.lane.b32.xlu0 %v200, 256
    %v203 = vpop.permute.xlu0 %202
    %v204 = vlaneseq
    %v205 = vshrl.u32 %v204, 7
    %v206 = vsub.s32 1, %v205
    %v207 = vrot.slane %v196, %v206
    %209 = vbcast.lane.b32.xlu0 %v207, 256
    %v210 = vpop.permute.xlu0 %209
    %v211 = vlaneseq
    %v212 = vshrl.u32 %v211, 7
    %v213 = vsub.s32 2, %v212
    %v214 = vrot.slane %v196, %v213
    %216 = vbcast.lane.b32.xlu0 %v214, 256
    %v217 = vpop.permute.xlu0 %216
    %v218 = vlaneseq
    %v219 = vshrl.u32 %v218, 7
    %v220 = vsub.s32 3, %v219
    %v221 = vrot.slane %v196, %v220
    %223 = vbcast.lane.b32.xlu0 %v221, 256
    %v224 = vpop.permute.xlu0 %223
    %v225 = vlaneseq
    %v226 = vshrl.u32 %v225, 7
    %v227 = vsub.s32 4, %v226
    %v228 = vrot.slane %v196, %v227
    %230 = vbcast.lane.b32.xlu0 %v228, 256
    %v231 = vpop.permute.xlu0 %230
    %v232 = vlaneseq
    %v233 = vshrl.u32 %v232, 7
    %v234 = vsub.s32 5, %v233
    %v235 = vrot.slane %v196, %v234
    %237 = vbcast.lane.b32.xlu0 %v235, 256
    %v238 = vpop.permute.xlu0 %237
    %v239 = vlaneseq
    %v240 = vshrl.u32 %v239, 7
    %v241 = vsub.s32 6, %v240
    %v242 = vrot.slane %v196, %v241
    %244 = vbcast.lane.b32.xlu0 %v242, 256
    %v245 = vpop.permute.xlu0 %244
    %v246 = vlaneseq
    %v247 = vshrl.u32 %v246, 7
    %v248 = vsub.s32 7, %v247
    %v249 = vrot.slane %v196, %v248
    %251 = vbcast.lane.b32.xlu0 %v249, 256
    %v252 = vpop.permute.xlu0 %251
    %v253 = vadd.f32 %v158, %v203
    %v254 = vadd.f32 %v160, %v203
    %v255 = vadd.f32 %v162, %v210
    %v256 = vadd.f32 %v164, %v210
    %v257 = vadd.f32 %v168, %v217
    %v258 = vadd.f32 %v170, %v217
    %v259 = vadd.f32 %v172, %v224
    %v260 = vadd.f32 %v174, %v224
    %v261 = vadd.f32 %v178, %v231
    %v262 = vadd.f32 %v180, %v231
    %v263 = vadd.f32 %v182, %v238
    %v264 = vadd.f32 %v184, %v238
    %v265 = vadd.f32 %v188, %v245
    %v266 = vadd.f32 %v190, %v245
    %v267 = vadd.f32 %v192, %v252
    %v268 = vadd.f32 %v194, %v252
    %v269 = vrot.slane %v253, 4
    %v270 = vmax.f32 %v253, %v269
    %v271 = vrot.slane %v270, 2
    %v272 = vmax.f32 %v270, %v271
    %v273 = vrot.slane %v272, 1
    %v274 = vmax.f32 %v272, %v273
    %v275 = vrot.slane %v254, 4
    %v276 = vmax.f32 %v254, %v275
    %v277 = vrot.slane %v276, 2
    %v278 = vmax.f32 %v276, %v277
    %v279 = vrot.slane %v278, 1
    %v280 = vmax.f32 %v278, %v279
    %v281 = vrot.slane %v255, 4
    %v282 = vmax.f32 %v255, %v281
    %v283 = vrot.slane %v282, 2
    %v284 = vmax.f32 %v282, %v283
    %v285 = vrot.slane %v284, 1
    %v286 = vmax.f32 %v284, %v285
    %v287 = vrot.slane %v256, 4
    %v288 = vmax.f32 %v256, %v287
    %v289 = vrot.slane %v288, 2
    %v290 = vmax.f32 %v288, %v289
    %v291 = vrot.slane %v290, 1
    %v292 = vmax.f32 %v290, %v291
    %v293 = vrot.slane %v257, 4
    %v294 = vmax.f32 %v257, %v293
    %v295 = vrot.slane %v294, 2
    %v296 = vmax.f32 %v294, %v295
    %v297 = vrot.slane %v296, 1
    %v298 = vmax.f32 %v296, %v297
    %v299 = vrot.slane %v258, 4
    %v300 = vmax.f32 %v258, %v299
    %v301 = vrot.slane %v300, 2
    %v302 = vmax.f32 %v300, %v301
    %v303 = vrot.slane %v302, 1
    %v304 = vmax.f32 %v302, %v303
    %v305 = vrot.slane %v259, 4
    %v306 = vmax.f32 %v259, %v305
    %v307 = vrot.slane %v306, 2
    %v308 = vmax.f32 %v306, %v307
    %v309 = vrot.slane %v308, 1
    %v310 = vmax.f32 %v308, %v309
    %v311 = vrot.slane %v260, 4
    %v312 = vmax.f32 %v260, %v311
    %v313 = vrot.slane %v312, 2
    %v314 = vmax.f32 %v312, %v313
    %v315 = vrot.slane %v314, 1
    %v316 = vmax.f32 %v314, %v315
    %v317 = vrot.slane %v261, 4
    %v318 = vmax.f32 %v261, %v317
    %v319 = vrot.slane %v318, 2
    %v320 = vmax.f32 %v318, %v319
    %v321 = vrot.slane %v320, 1
    %v322 = vmax.f32 %v320, %v321
    %v323 = vrot.slane %v262, 4
    %v324 = vmax.f32 %v262, %v323
    %v325 = vrot.slane %v324, 2
    %v326 = vmax.f32 %v324, %v325
    %v327 = vrot.slane %v326, 1
    %v328 = vmax.f32 %v326, %v327
    %v329 = vrot.slane %v263, 4
    %v330 = vmax.f32 %v263, %v329
    %v331 = vrot.slane %v330, 2
    %v332 = vmax.f32 %v330, %v331
    %v333 = vrot.slane %v332, 1
    %v334 = vmax.f32 %v332, %v333
    %v335 = vrot.slane %v264, 4
    %v336 = vmax.f32 %v264, %v335
    %v337 = vrot.slane %v336, 2
    %v338 = vmax.f32 %v336, %v337
    %v339 = vrot.slane %v338, 1
    %v340 = vmax.f32 %v338, %v339
    %v341 = vrot.slane %v265, 4
    %v342 = vmax.f32 %v265, %v341
    %v343 = vrot.slane %v342, 2
    %v344 = vmax.f32 %v342, %v343
    %v345 = vrot.slane %v344, 1
    %v346 = vmax.f32 %v344, %v345
    %v347 = vrot.slane %v266, 4
    %v348 = vmax.f32 %v266, %v347
    %v349 = vrot.slane %v348, 2
    %v350 = vmax.f32 %v348, %v349
    %v351 = vrot.slane %v350, 1
    %v352 = vmax.f32 %v350, %v351
    %v353 = vrot.slane %v267, 4
    %v354 = vmax.f32 %v267, %v353
    %v355 = vrot.slane %v354, 2
    %v356 = vmax.f32 %v354, %v355
    %v357 = vrot.slane %v356, 1
    %v358 = vmax.f32 %v356, %v357
    %v359 = vrot.slane %v268, 4
    %v360 = vmax.f32 %v268, %v359
    %v361 = vrot.slane %v360, 2
    %v362 = vmax.f32 %v360, %v361
    %v363 = vrot.slane %v362, 1
    %v364 = vmax.f32 %v362, %v363
    %v365 = vld [vmem:[%s3] sm:$0x3]
    %v367 = vlaneseq
    %v368 = vshrl.u32 %v367, 7
    %v369 = vsub.s32 0, %v368
    %v370 = vrot.slane %v365, %v369
    %v371 = vlaneseq
    %v372 = vshrl.u32 %v371, 7
    %v373 = vsub.s32 1, %v372
    %v374 = vrot.slane %v365, %v373
    %v377 = vadd.f32 %v274, %v370
    %v378 = vadd.f32 %v280, %v374
    %v379 = vadd.f32 %v286, %v370
    %v380 = vadd.f32 %v292, %v374
    %v381 = vadd.f32 %v298, %v370
    %v382 = vadd.f32 %v304, %v374
    %v383 = vadd.f32 %v310, %v370
    %v384 = vadd.f32 %v316, %v374
    %v385 = vadd.f32 %v322, %v370
    %v386 = vadd.f32 %v328, %v374
    %v387 = vadd.f32 %v334, %v370
    %v388 = vadd.f32 %v340, %v374
    %v389 = vadd.f32 %v346, %v370
    %v390 = vadd.f32 %v352, %v374
    %v391 = vadd.f32 %v358, %v370
    %v392 = vadd.f32 %v364, %v374
    %v393 = vmax.f32 %v377, 0.0
    %v394 = vmax.f32 %v378, 0.0
    %v395 = vmax.f32 %v379, 0.0
    %v396 = vmax.f32 %v380, 0.0
    %v397 = vmax.f32 %v381, 0.0
    %v398 = vmax.f32 %v382, 0.0
    %v399 = vmax.f32 %v383, 0.0
    %v400 = vmax.f32 %v384, 0.0
    %v401 = vmax.f32 %v385, 0.0
    %v402 = vmax.f32 %v386, 0.0
    %v403 = vmax.f32 %v387, 0.0
    %v404 = vmax.f32 %v388, 0.0
    %v405 = vmax.f32 %v389, 0.0
    %v406 = vmax.f32 %v390, 0.0
    %v407 = vmax.f32 %v391, 0.0
    %v408 = vmax.f32 %v392, 0.0
    %v409 = vadd.f32 %v393, 1.0
    %v410 = vlog2.pop %v409
    %v411 = vmul.f32 %v410, 0.6931472
    %v412 = vmul.f32 -0.5, %v393
    %v413 = vadd.f32 %v412, 1.0
    %v414 = vmul.f32 %v413, %v393
    %v415 = vand.u32 2147483647, %v393
    %vm416 = vcmp.lt.f32.partialorder %v415, 0.0004427343
    %v417 = vsel %vm416, %v414, %v411
    %v418 = vadd.f32 %v394, 1.0
    %v419 = vlog2.pop %v418
    %v420 = vmul.f32 %v419, 0.6931472
    %v421 = vmul.f32 -0.5, %v394
    %v422 = vadd.f32 %v421, 1.0
    %v423 = vmul.f32 %v422, %v394
    %v424 = vand.u32 2147483647, %v394
    %vm425 = vcmp.lt.f32.partialorder %v424, 0.0004427343
    %v426 = vsel %vm425, %v423, %v420
    %v427 = vadd.f32 %v395, 1.0
    %v428 = vlog2.pop %v427
    %v429 = vmul.f32 %v428, 0.6931472
    %v430 = vmul.f32 -0.5, %v395
    %v431 = vadd.f32 %v430, 1.0
    %v432 = vmul.f32 %v431, %v395
    %v433 = vand.u32 2147483647, %v395
    %vm434 = vcmp.lt.f32.partialorder %v433, 0.0004427343
    %v435 = vsel %vm434, %v432, %v429
    %v436 = vadd.f32 %v396, 1.0
    %v437 = vlog2.pop %v436
    %v438 = vmul.f32 %v437, 0.6931472
    %v439 = vmul.f32 -0.5, %v396
    %v440 = vadd.f32 %v439, 1.0
    %v441 = vmul.f32 %v440, %v396
    %v442 = vand.u32 2147483647, %v396
    %vm443 = vcmp.lt.f32.partialorder %v442, 0.0004427343
    %v444 = vsel %vm443, %v441, %v438
    %v445 = vadd.f32 %v397, 1.0
    %v446 = vlog2.pop %v445
    %v447 = vmul.f32 %v446, 0.6931472
    %v448 = vmul.f32 -0.5, %v397
    %v449 = vadd.f32 %v448, 1.0
    %v450 = vmul.f32 %v449, %v397
    %v451 = vand.u32 2147483647, %v397
    %vm452 = vcmp.lt.f32.partialorder %v451, 0.0004427343
    %v453 = vsel %vm452, %v450, %v447
    %v454 = vadd.f32 %v398, 1.0
    %v455 = vlog2.pop %v454
    %v456 = vmul.f32 %v455, 0.6931472
    %v457 = vmul.f32 -0.5, %v398
    %v458 = vadd.f32 %v457, 1.0
    %v459 = vmul.f32 %v458, %v398
    %v460 = vand.u32 2147483647, %v398
    %vm461 = vcmp.lt.f32.partialorder %v460, 0.0004427343
    %v462 = vsel %vm461, %v459, %v456
    %v463 = vadd.f32 %v399, 1.0
    %v464 = vlog2.pop %v463
    %v465 = vmul.f32 %v464, 0.6931472
    %v466 = vmul.f32 -0.5, %v399
    %v467 = vadd.f32 %v466, 1.0
    %v468 = vmul.f32 %v467, %v399
    %v469 = vand.u32 2147483647, %v399
    %vm470 = vcmp.lt.f32.partialorder %v469, 0.0004427343
    %v471 = vsel %vm470, %v468, %v465
    %v472 = vadd.f32 %v400, 1.0
    %v473 = vlog2.pop %v472
    %v474 = vmul.f32 %v473, 0.6931472
    %v475 = vmul.f32 -0.5, %v400
    %v476 = vadd.f32 %v475, 1.0
    %v477 = vmul.f32 %v476, %v400
    %v478 = vand.u32 2147483647, %v400
    %vm479 = vcmp.lt.f32.partialorder %v478, 0.0004427343
    %v480 = vsel %vm479, %v477, %v474
    %v481 = vadd.f32 %v401, 1.0
    %v482 = vlog2.pop %v481
    %v483 = vmul.f32 %v482, 0.6931472
    %v484 = vmul.f32 -0.5, %v401
    %v485 = vadd.f32 %v484, 1.0
    %v486 = vmul.f32 %v485, %v401
    %v487 = vand.u32 2147483647, %v401
    %vm488 = vcmp.lt.f32.partialorder %v487, 0.0004427343
    %v489 = vsel %vm488, %v486, %v483
    %v490 = vadd.f32 %v402, 1.0
    %v491 = vlog2.pop %v490
    %v492 = vmul.f32 %v491, 0.6931472
    %v493 = vmul.f32 -0.5, %v402
    %v494 = vadd.f32 %v493, 1.0
    %v495 = vmul.f32 %v494, %v402
    %v496 = vand.u32 2147483647, %v402
    %vm497 = vcmp.lt.f32.partialorder %v496, 0.0004427343
    %v498 = vsel %vm497, %v495, %v492
    %v499 = vadd.f32 %v403, 1.0
    %v500 = vlog2.pop %v499
    %v501 = vmul.f32 %v500, 0.6931472
    %v502 = vmul.f32 -0.5, %v403
    %v503 = vadd.f32 %v502, 1.0
    %v504 = vmul.f32 %v503, %v403
    %v505 = vand.u32 2147483647, %v403
    %vm506 = vcmp.lt.f32.partialorder %v505, 0.0004427343
    %v507 = vsel %vm506, %v504, %v501
    %v508 = vadd.f32 %v404, 1.0
    %v509 = vlog2.pop %v508
    %v510 = vmul.f32 %v509, 0.6931472
    %v511 = vmul.f32 -0.5, %v404
    %v512 = vadd.f32 %v511, 1.0
    %v513 = vmul.f32 %v512, %v404
    %v514 = vand.u32 2147483647, %v404
    %vm515 = vcmp.lt.f32.partialorder %v514, 0.0004427343
    %v516 = vsel %vm515, %v513, %v510
    %v517 = vadd.f32 %v405, 1.0
    %v518 = vlog2.pop %v517
    %v519 = vmul.f32 %v518, 0.6931472
    %v520 = vmul.f32 -0.5, %v405
    %v521 = vadd.f32 %v520, 1.0
    %v522 = vmul.f32 %v521, %v405
    %v523 = vand.u32 2147483647, %v405
    %vm524 = vcmp.lt.f32.partialorder %v523, 0.0004427343
    %v525 = vsel %vm524, %v522, %v519
    %v526 = vadd.f32 %v406, 1.0
    %v527 = vlog2.pop %v526
    %v528 = vmul.f32 %v527, 0.6931472
    %v529 = vmul.f32 -0.5, %v406
    %v530 = vadd.f32 %v529, 1.0
    %v531 = vmul.f32 %v530, %v406
    %v532 = vand.u32 2147483647, %v406
    %vm533 = vcmp.lt.f32.partialorder %v532, 0.0004427343
    %v534 = vsel %vm533, %v531, %v528
    %v535 = vadd.f32 %v407, 1.0
    %v536 = vlog2.pop %v535
    %v537 = vmul.f32 %v536, 0.6931472
    %v538 = vmul.f32 -0.5, %v407
    %v539 = vadd.f32 %v538, 1.0
    %v540 = vmul.f32 %v539, %v407
    %v541 = vand.u32 2147483647, %v407
    %vm542 = vcmp.lt.f32.partialorder %v541, 0.0004427343
    %v543 = vsel %vm542, %v540, %v537
    %v544 = vadd.f32 %v408, 1.0
    %v545 = vlog2.pop %v544
    %v546 = vmul.f32 %v545, 0.6931472
    %v547 = vmul.f32 -0.5, %v408
    %v548 = vadd.f32 %v547, 1.0
    %v549 = vmul.f32 %v548, %v408
    %v550 = vand.u32 2147483647, %v408
    %vm551 = vcmp.lt.f32.partialorder %v550, 0.0004427343
    %v552 = vsel %vm551, %v549, %v546
    %v569 = vrot.slane %v435, 7
    %vm570 = vcmask 1041409
    %v571 = vsel %vm570, %v569, %v417
    %v572 = vrot.slane %v453, 6
    %vm573 = vcmask 1042434
    %v574 = vsel %vm573, %v572, %v571
    %v575 = vrot.slane %v471, 5
    %vm576 = vcmask 1043459
    %v577 = vsel %vm576, %v575, %v574
    %v578 = vrot.slane %v489, 4
    %vm579 = vcmask 1044484
    %v580 = vsel %vm579, %v578, %v577
    %v581 = vrot.slane %v507, 3
    %vm582 = vcmask 1045509
    %v583 = vsel %vm582, %v581, %v580
    %v584 = vrot.slane %v525, 2
    %vm585 = vcmask 1046534
    %v586 = vsel %vm585, %v584, %v583
    %v587 = vrot.slane %v543, 1
    %vm588 = vcmask 1047559
    %v589 = vsel %vm588, %v587, %v586
    %v590 = vrot.slane %v444, 7
    %v591 = vsel %vm570, %v590, %v426
    %v592 = vrot.slane %v462, 6
    %v593 = vsel %vm573, %v592, %v591
    %v594 = vrot.slane %v480, 5
    %v595 = vsel %vm576, %v594, %v593
    %v596 = vrot.slane %v498, 4
    %v597 = vsel %vm579, %v596, %v595
    %v598 = vrot.slane %v516, 3
    %v599 = vsel %vm582, %v598, %v597
    %v600 = vrot.slane %v534, 2
    %v601 = vsel %vm585, %v600, %v599
    %v602 = vrot.slane %v552, 1
    %v603 = vsel %vm588, %v602, %v601
    %606 = vst [vmem:[#allocation8] sm:$0xff] %v589
    %607 = vst [vmem:[#allocation8 + $0x8] sm:$0xff] %v603
    // Predicated region
    $region30: #{tpu_custom_call.1} parent=1 // pred_check
      _
    $region31: #{tpu_custom_call.1} parent=1 // pred_check_branch
      %609 = sbr.rel (0) target = $region33
    $region32: #{tpu_custom_call.1} parent=1 // pred_region
      %s611 = ssub.s32 256, 256
      %612 = vsyncadd [#allocation4], %s611
      %s614 = sshll.u32 [#allocation8], 4
      %s615 = int_to_ptr.vmem [resolvable:$true] %s614
      %617 = dma.vmem_to_hbm [thread:$0]  %s615, 256, %s4, [#allocation4]
    $region33: #{tpu_custom_call.1} parent=1 // pred_fallthru
      _
    // Predicated region
    $region34: #{tpu_custom_call.1} parent=1 // pred_check
      _
    $region35: #{tpu_custom_call.1} parent=1 // pred_check_branch
      %619 = sbr.rel (0) target = $region37
    $region36: #{tpu_custom_call.1} parent=1 // pred_region
      %620 = dma.done [#allocation4], 256
    $region37: #{tpu_custom_call.1} parent=1 // pred_fallthru
      _
    %621 = vsyncpa [#allocation3], 1
    %622 = vsyncpa [#allocation6], 1
    %623 = vsyncpa [#allocation4], 1

</llo_original>
